<compile_context>
chip_gen: v7x
topology: tpu7x:2x2x1
jax: 0.10.0
libtpu: 0.0.40
codegen_flags: <defaults>
</compile_context>

<pallas_src>
import functools

import jax
import jax.numpy as jnp
from jax.experimental import pallas as pl
from jax.experimental.pallas import tpu as pltpu

EPS = 1e-5  # nn.GroupNorm default eps


# ----------------------------- Pallas kernel ------------------------------- #

def _convl_fused_kernel(x_ref, w_ref, g_ref, b_ref, a_ref, o_ref,
                        *, B, H, W, Cin, Cout):
    """Fused 3x3 conv + GroupNorm(groups=1) + PReLU for B batch samples.

    x_ref: (B, H+2, (W+2)*Cin)       spatially padded input, (W+2, Cin) in lanes
    w_ref: (3, (W+2)*Cin, W*Cout)    per-kh block-banded conv weights (kw folded)
    g_ref, b_ref, a_ref: (1, W*Cout) gamma / beta / PReLU-alpha tiled over W
    o_ref: (B, H, W*Cout)
    """
    Kw = (W + 2) * Cin
    WCout = W * Cout
    M = B * H

    x = x_ref[...]                                   # (B, H+2, Kw)

    # ---- 3x3 conv: 3 banded full-lane-width matmuls, f32 accumulation ----
    # TODO(synk): optionally fold kh too (stack the 3 row-shifted views along K
    # for a single (M, 3*Kw) matmul) once Kw is padded to a lane multiple;
    # skipped here because Kw is not a multiple of 128, so the stacking stores
    # would themselves be lane-misaligned.
    acc = jnp.zeros((M, WCout), jnp.float32)
    for kh in range(3):
        xm = x[:, kh:kh + H, :].reshape(M, Kw)       # samples stacked along M
        acc = acc + jnp.dot(xm, w_ref[kh], preferred_element_type=jnp.float32)

    # ---- GroupNorm(num_groups=1): per-sample stats over C*H*W (one pass) ----
    acc3 = acc.reshape(B, H, WCout)
    n_elems = H * WCout
    s1 = jnp.sum(acc3, axis=(1, 2), keepdims=True)              # (B, 1, 1)
    s2 = jnp.sum(acc3 * acc3, axis=(1, 2), keepdims=True)       # (B, 1, 1)
    mean = s1 / n_elems
    var = s2 / n_elems - mean * mean                 # biased variance (PyTorch GN)
    scale = jax.lax.rsqrt(var + EPS) * g_ref[...]    # gamma folded into the scale
    y = (acc3 - mean) * scale + b_ref[...]

    # ---- PReLU (per-channel slope) ----
    y = jnp.where(y > 0, y, a_ref[...] * y)

    o_ref[...] = y.astype(o_ref.dtype)


# -------------------------------- wrapper ----------------------------------- #

def _pick_samples_per_step(N, H, target_m=256):
    """Samples per grid step: push M = B*H toward the MXU row depth, keep the
    grid length >= 2 when N >= 2 (v7x dual TensorCore), and divide N evenly."""
    b = max(1, min(N, target_m // max(H, 1)))
    if N >= 2:
        b = max(1, min(b, N // 2))
    while N % b:
        b -= 1
    return b


def convl_forward(x_nchw, w_torch, gamma, beta, alpha, *, mm_dtype=jnp.bfloat16):
    """ConvL forward. x_nchw: (N, Cin, H, W); w_torch: (Cout, Cin, 3, 3)."""
    N, Cin, H, W = x_nchw.shape
    Cout = w_torch.shape[0]
    out_dtype = x_nchw.dtype
    Kw = (W + 2) * Cin
    WCout = W * Cout

    # NCHW -> NHWC, zero-pad spatially (padding=1), flatten (W+2, Cin) -> lanes.
    x = jnp.transpose(x_nchw, (0, 2, 3, 1))
    xp = jnp.pad(x, ((0, 0), (1, 1), (1, 1), (0, 0)))
    xp = xp.reshape(N, H + 2, Kw).astype(mm_dtype)

    # Block-BANDED per-kh weight ((W+2)*Cin, W*Cout): the three kw taps become
    # Cin-wide bands at row offsets kw*Cin, so each kh is one full-lane-width
    # matmul in-kernel (no im2col, no lane-misaligned slices).
    w_taps = jnp.transpose(w_torch, (2, 3, 1, 0)).astype(jnp.float32)  # (3,3,Cin,Cout)
    w_band = jnp.zeros((3, W + 2, Cin, W, Cout), jnp.float32)
    p_idx = jnp.arange(W + 2)[:, None]
    w_idx = jnp.arange(W)[None, :]
    for kw in range(3):
        m = (p_idx == w_idx + kw).astype(jnp.float32)                  # (W+2, W)
        w_band = w_band + jnp.einsum('pw,kio->kpiwo', m, w_taps[:, kw])
    w_band = w_band.reshape(3, Kw, WCout).astype(mm_dtype)

    g = jnp.tile(gamma.astype(jnp.float32), W).reshape(1, WCout)
    b = jnp.tile(beta.astype(jnp.float32), W).reshape(1, WCout)
    a = jnp.tile(alpha.astype(jnp.float32), W).reshape(1, WCout)

    B = _pick_samples_per_step(N, H)
    kernel = functools.partial(_convl_fused_kernel,
                               B=B, H=H, W=W, Cin=Cin, Cout=Cout)

    out = pl.pallas_call(
        kernel,
        out_shape=jax.ShapeDtypeStruct((N, H, WCout), out_dtype),
        grid=(N // B,),
        in_specs=[
            pl.BlockSpec((B, H + 2, Kw), lambda n: (n, 0, 0)),
            # Constant-index blocks (tiny here; mark pl.Buffered(1) if grown).
            pl.BlockSpec((3, Kw, WCout), lambda n: (0, 0, 0)),
            pl.BlockSpec((1, WCout), lambda n: (0, 0)),
            pl.BlockSpec((1, WCout), lambda n: (0, 0)),
            pl.BlockSpec((1, WCout), lambda n: (0, 0)),
        ],
        out_specs=pl.BlockSpec((B, H, WCout), lambda n: (n, 0, 0)),
        compiler_params=pltpu.CompilerParams(dimension_semantics=("parallel",)),
    )(xp, w_band, g, b, a)

    # (N, H, W*Cout) -> NCHW
    return jnp.transpose(out.reshape(N, H, W, Cout), (0, 3, 1, 2))


# ------------------------- pure-JAX reference ------------------------------- #

def convl_ref(x_nchw, w, gamma, beta, alpha):
    y = jax.lax.conv_general_dilated(
        x_nchw.astype(jnp.float32), w.astype(jnp.float32),
        window_strides=(1, 1), padding=((1, 1), (1, 1)),
        dimension_numbers=('NCHW', 'OIHW', 'NCHW'))
    mean = jnp.mean(y, axis=(1, 2, 3), keepdims=True)
    var = jnp.mean((y - mean) ** 2, axis=(1, 2, 3), keepdims=True)
    yn = (y - mean) * jax.lax.rsqrt(var + EPS)
    yn = yn * gamma[None, :, None, None] + beta[None, :, None, None]
    return jnp.where(yn > 0, yn, alpha[None, :, None, None] * yn)


# ---------------------------------- main ------------------------------------ #

if __name__ == "__main__":
    key = jax.random.PRNGKey(0)
    kx, kw, kg, kb = jax.random.split(key, 4)

    N, inchannel, channel, H, W = 2, 4, 8, 16, 16

    x = jax.random.normal(kx, (N, inchannel, H, W), jnp.float32)
    w = (jax.random.normal(kw, (channel, inchannel, 3, 3), jnp.float32)
         / jnp.sqrt(9.0 * inchannel))
    gamma = 1.0 + 0.1 * jax.random.normal(kg, (channel,), jnp.float32)
    beta = 0.1 * jax.random.normal(kb, (channel,), jnp.float32)
    alpha = jnp.full((channel,), 0.25, jnp.float32)      # nn.PReLU(channel) init

    fwd = jax.jit(convl_forward)
    out = fwd(x, w, gamma, beta, alpha)
    jax.block_until_ready(out)

    assert out.shape == (N, channel, H, W)
    assert bool(jnp.all(jnp.isfinite(out)))

    ref = convl_ref(x, w, gamma, beta, alpha)
    err = float(jnp.max(jnp.abs(out - ref)))
    assert err < 5e-2, f"max abs err vs reference: {err}"

    print("KERNEL_OK")
</pallas_src>

<mosaic_0001>
module attributes {stable_mosaic.version = 11 : i64} {
  func.func @_convl_fused_kernel(%arg0: i32, %arg1: memref<1x18x72xbf16, #tpu.memory_space<vmem>>, %arg2: memref<3x72x128xbf16, #tpu.memory_space<vmem>>, %arg3: memref<1x128xf32, #tpu.memory_space<vmem>>, %arg4: memref<1x128xf32, #tpu.memory_space<vmem>>, %arg5: memref<1x128xf32, #tpu.memory_space<vmem>>, %arg6: memref<1x16x128xf32, #tpu.memory_space<vmem>>) attributes {dimension_semantics = [#tpu.dimension_semantics<parallel>], iteration_bounds = array<i64: 2>, scalar_prefetch = 0 : i64, scratch_operands = 0 : i64, tpu.core_type = #tpu.core_type<tc>, window_params = [{transform_indices = @transform_0, window_bounds = array<i64: 1, 18, 72>}, {pipeline_mode = #tpu.pipeline_mode<synchronous>, transform_indices = @transform_1, window_bounds = array<i64: 3, 72, 128>}, {pipeline_mode = #tpu.pipeline_mode<synchronous>, transform_indices = @transform_2, window_bounds = array<i64: 1, 128>}, {pipeline_mode = #tpu.pipeline_mode<synchronous>, transform_indices = @transform_3, window_bounds = array<i64: 1, 128>}, {pipeline_mode = #tpu.pipeline_mode<synchronous>, transform_indices = @transform_4, window_bounds = array<i64: 1, 128>}, {transform_indices = @transform_5, window_bounds = array<i64: 1, 16, 128>}]} {
    %c0 = arith.constant 0 : index
    %c0_0 = arith.constant 0 : index
    %c0_1 = arith.constant 0 : index
    %0 = vector.load %arg1[%c0, %c0_0, %c0_1] : memref<1x18x72xbf16, #tpu.memory_space<vmem>>, vector<1x18x72xbf16>
    %cst = arith.constant 0.000000e+00 : f32
    %1 = vector.broadcast %cst : f32 to vector<16x128xf32>
    %2 = vector.extract_strided_slice %0 {offsets = [0, 0, 0], sizes = [1, 16, 72], strides = [1, 1, 1]} : vector<1x18x72xbf16> to vector<1x16x72xbf16>
    %3 = vector.shape_cast %2 : vector<1x16x72xbf16> to vector<16x72xbf16>
    %c0_2 = arith.constant 0 : index
    %c0_3 = arith.constant 0 : index
    %c0_4 = arith.constant 0 : index
    %4 = vector.load %arg2[%c0_2, %c0_3, %c0_4] : memref<3x72x128xbf16, #tpu.memory_space<vmem>>, vector<1x72x128xbf16>
    %5 = vector.shape_cast %4 : vector<1x72x128xbf16> to vector<72x128xbf16>
    %cst_5 = arith.constant dense<0.000000e+00> : vector<16x128xf32>
    %6 = tpu.matmul %3, %5, %cst_5 {dimension_numbers = #tpu.dot_dimension_numbers<[1], [0], [0], [1], [0, 0, 1, 1], [], []>} : vector<16x72xbf16>, vector<72x128xbf16>, vector<16x128xf32> -> vector<16x128xf32>
    %7 = arith.addf %1, %6 : vector<16x128xf32>
    %8 = vector.extract_strided_slice %0 {offsets = [0, 1, 0], sizes = [1, 16, 72], strides = [1, 1, 1]} : vector<1x18x72xbf16> to vector<1x16x72xbf16>
    %9 = vector.shape_cast %8 : vector<1x16x72xbf16> to vector<16x72xbf16>
    %c1 = arith.constant 1 : index
    %c0_6 = arith.constant 0 : index
    %c0_7 = arith.constant 0 : index
    %10 = vector.load %arg2[%c1, %c0_6, %c0_7] : memref<3x72x128xbf16, #tpu.memory_space<vmem>>, vector<1x72x128xbf16>
    %11 = vector.shape_cast %10 : vector<1x72x128xbf16> to vector<72x128xbf16>
    %cst_8 = arith.constant dense<0.000000e+00> : vector<16x128xf32>
    %12 = tpu.matmul %9, %11, %cst_8 {dimension_numbers = #tpu.dot_dimension_numbers<[1], [0], [0], [1], [0, 0, 1, 1], [], []>} : vector<16x72xbf16>, vector<72x128xbf16>, vector<16x128xf32> -> vector<16x128xf32>
    %13 = arith.addf %7, %12 : vector<16x128xf32>
    %14 = vector.extract_strided_slice %0 {offsets = [0, 2, 0], sizes = [1, 16, 72], strides = [1, 1, 1]} : vector<1x18x72xbf16> to vector<1x16x72xbf16>
    %15 = vector.shape_cast %14 : vector<1x16x72xbf16> to vector<16x72xbf16>
    %c2 = arith.constant 2 : index
    %c0_9 = arith.constant 0 : index
    %c0_10 = arith.constant 0 : index
    %16 = vector.load %arg2[%c2, %c0_9, %c0_10] : memref<3x72x128xbf16, #tpu.memory_space<vmem>>, vector<1x72x128xbf16>
    %17 = vector.shape_cast %16 : vector<1x72x128xbf16> to vector<72x128xbf16>
    %cst_11 = arith.constant dense<0.000000e+00> : vector<16x128xf32>
    %18 = tpu.matmul %15, %17, %cst_11 {dimension_numbers = #tpu.dot_dimension_numbers<[1], [0], [0], [1], [0, 0, 1, 1], [], []>} : vector<16x72xbf16>, vector<72x128xbf16>, vector<16x128xf32> -> vector<16x128xf32>
    %19 = arith.addf %13, %18 : vector<16x128xf32>
    %20 = vector.shape_cast %19 : vector<16x128xf32> to vector<1x16x128xf32>
    %cst_12 = arith.constant dense<0.000000e+00> : vector<1xf32>
    %21 = vector.multi_reduction <add>, %20, %cst_12 [1, 2] : vector<1x16x128xf32> to vector<1xf32>
    %22 = vector.shape_cast %21 : vector<1xf32> to vector<1x1x1xf32>
    %23 = arith.mulf %20, %20 : vector<1x16x128xf32>
    %cst_13 = arith.constant dense<0.000000e+00> : vector<1xf32>
    %24 = vector.multi_reduction <add>, %23, %cst_13 [1, 2] : vector<1x16x128xf32> to vector<1xf32>
    %25 = vector.shape_cast %24 : vector<1xf32> to vector<1x1x1xf32>
    %cst_14 = arith.constant 2.048000e+03 : f32
    %26 = vector.broadcast %cst_14 : f32 to vector<1x1x1xf32>
    %27 = arith.divf %22, %26 : vector<1x1x1xf32>
    %cst_15 = arith.constant 2.048000e+03 : f32
    %28 = vector.broadcast %cst_15 : f32 to vector<1x1x1xf32>
    %29 = arith.divf %25, %28 : vector<1x1x1xf32>
    %30 = arith.mulf %27, %27 : vector<1x1x1xf32>
    %31 = arith.subf %29, %30 : vector<1x1x1xf32>
    %cst_16 = arith.constant 9.99999974E-6 : f32
    %32 = vector.broadcast %cst_16 : f32 to vector<1x1x1xf32>
    %33 = arith.addf %31, %32 : vector<1x1x1xf32>
    %34 = math.rsqrt %33 : vector<1x1x1xf32>
    %c0_17 = arith.constant 0 : index
    %c0_18 = arith.constant 0 : index
    %35 = vector.load %arg3[%c0_17, %c0_18] : memref<1x128xf32, #tpu.memory_space<vmem>>, vector<1x128xf32>
    %36 = vector.shape_cast %35 : vector<1x128xf32> to vector<1x1x128xf32>
    %37 = vector.broadcast %34 : vector<1x1x1xf32> to vector<1x1x128xf32>
    %38 = arith.mulf %37, %36 : vector<1x1x128xf32>
    %39 = vector.broadcast %27 : vector<1x1x1xf32> to vector<1x16x128xf32>
    %40 = arith.subf %20, %39 : vector<1x16x128xf32>
    %41 = vector.broadcast %38 : vector<1x1x128xf32> to vector<1x16x128xf32>
    %42 = arith.mulf %40, %41 : vector<1x16x128xf32>
    %c0_19 = arith.constant 0 : index
    %c0_20 = arith.constant 0 : index
    %43 = vector.load %arg4[%c0_19, %c0_20] : memref<1x128xf32, #tpu.memory_space<vmem>>, vector<1x128xf32>
    %44 = vector.shape_cast %43 : vector<1x128xf32> to vector<1x1x128xf32>
    %45 = vector.broadcast %44 : vector<1x1x128xf32> to vector<1x16x128xf32>
    %46 = arith.addf %42, %45 : vector<1x16x128xf32>
    %cst_21 = arith.constant 0.000000e+00 : f32
    %47 = vector.broadcast %cst_21 : f32 to vector<1x16x128xf32>
    %48 = arith.cmpf ogt, %46, %47 : vector<1x16x128xf32>
    %c0_22 = arith.constant 0 : index
    %c0_23 = arith.constant 0 : index
    %49 = vector.load %arg5[%c0_22, %c0_23] : memref<1x128xf32, #tpu.memory_space<vmem>>, vector<1x128xf32>
    %50 = vector.shape_cast %49 : vector<1x128xf32> to vector<1x1x128xf32>
    %51 = vector.broadcast %50 : vector<1x1x128xf32> to vector<1x16x128xf32>
    %52 = arith.mulf %51, %46 : vector<1x16x128xf32>
    %53 = arith.select %48, %46, %52 : vector<1x16x128xi1>, vector<1x16x128xf32>
    %c0_24 = arith.constant 0 : index
    %c0_25 = arith.constant 0 : index
    %c0_26 = arith.constant 0 : index
    %54 = vector.load %arg6[%c0_24, %c0_25, %c0_26] : memref<1x16x128xf32, #tpu.memory_space<vmem>>, vector<1x16x128xf32>
    tpu.vector_store %arg6[%c0_24, %c0_25, %c0_26], %53 {strides = array<i32>} : memref<1x16x128xf32, #tpu.memory_space<vmem>>, vector<1x16x128xf32>,
    return
  }
  func.func @transform_0(%arg0: i32) -> (i32, i32, i32) {
    %c0_i32 = arith.constant 0 : i32
    %c0_i32_0 = arith.constant 0 : i32
    %c0_i32_1 = arith.constant 0 : i32
    return %arg0, %c0_i32, %c0_i32_0 : i32, i32, i32
  }
  func.func @transform_1(%arg0: i32) -> (i32, i32, i32) {
    %c0_i32 = arith.constant 0 : i32
    %c0_i32_0 = arith.constant 0 : i32
    %c0_i32_1 = arith.constant 0 : i32
    %c0_i32_2 = arith.constant 0 : i32
    return %c0_i32, %c0_i32_0, %c0_i32_1 : i32, i32, i32
  }
  func.func @transform_2(%arg0: i32) -> (i32, i32) {
    %c0_i32 = arith.constant 0 : i32
    %c0_i32_0 = arith.constant 0 : i32
    %c0_i32_1 = arith.constant 0 : i32
    return %c0_i32, %c0_i32_0 : i32, i32
  }
  func.func @transform_3(%arg0: i32) -> (i32, i32) {
    %c0_i32 = arith.constant 0 : i32
    %c0_i32_0 = arith.constant 0 : i32
    %c0_i32_1 = arith.constant 0 : i32
    return %c0_i32, %c0_i32_0 : i32, i32
  }
  func.func @transform_4(%arg0: i32) -> (i32, i32) {
    %c0_i32 = arith.constant 0 : i32
    %c0_i32_0 = arith.constant 0 : i32
    %c0_i32_1 = arith.constant 0 : i32
    return %c0_i32, %c0_i32_0 : i32, i32
  }
  func.func @transform_5(%arg0: i32) -> (i32, i32, i32) {
    %c0_i32 = arith.constant 0 : i32
    %c0_i32_0 = arith.constant 0 : i32
    %c0_i32_1 = arith.constant 0 : i32
    return %arg0, %c0_i32, %c0_i32_0 : i32, i32, i32
  }
}

</mosaic_0001>

<llo_original>
// kernel: tile.18
$region0: #{tile.18}
  #allocation0 [shape = 's32[1]{0}', space=sflag, size = 0x4, scoped, tag = 'scoped memory for tile.18']
  %s0 = inlined_call_operand.vmem [shape: f32[8], index: 0, kind: input, shape index: {}]
  %s1 = inlined_call_operand.vmem [shape: f32[16,8], index: 1, kind: output, shape index: {}]
  // Predicated region
  $region2: #{tile.18} parent=0 // pred_check
    _
  $region3: #{tile.18} parent=0 // pred_check_branch
    %3 = sbr.rel (0) target = $region5
  $region4: #{tile.18} parent=0 // pred_region
    _
  $region5: #{tile.18} parent=0 // pred_fallthru
    _
  %v4 = vld [vmem:[%s0] ss:$0 sm:$0xff]
  %5 = vst [vmem:[%s1] sm:$0xff] %v4
  %s6 = scalar_lea.vmem %s1, 8
  %7 = vst [vmem:[%s6] sm:$0xff] %v4

// kernel: tile.19
$region0: #{tile.19}
  %s0 = inlined_call_operand.vmem [shape: f32[16,8], index: 0, kind: input, shape index: {}]
  %s1 = inlined_call_operand.vmem [shape: f32[1,128], index: 1, kind: output, shape index: {}]
  $region1: #{tile.19} parent=0
    #allocation0 [shape = 'u8[4096]{0}', space=vmem, size = 0x1000, scoped, tag = 'scoped mem for output reshape']
    %v2 = vld [vmem:[%s0] sm:$0x1]
    %vm3 = vcmask 64512
    %4 = vst.msk [vmem:[#allocation0] sm:$0x1] %vm3, %v2
    %s5 = scalar_lea.vmem %s0, 15
    %v6 = vld [vmem:[%s5] sm:$0x1]
    %7 = vrot.lane.b32.xlu0 %v6, 120
    %v8 = vpop.permute.xlu0 %7
    %vm9 = vcmask 1048512
    %10 = vst.msk [vmem:[#allocation0] sm:$0x1] %vm9, %v8
    %s11 = scalar_lea.vmem %s0, 14
    %v12 = vld [vmem:[%s11] sm:$0x1]
    %13 = vrot.lane.b32.xlu0 %v12, 112
    %v14 = vpop.permute.xlu0 %13
    %vm15 = vcmask 982912
    %16 = vst.msk [vmem:[#allocation0] sm:$0x1] %vm15, %v14
    %s17 = scalar_lea.vmem %s0, 13
    %v18 = vld [vmem:[%s17] sm:$0x1]
    %19 = vrot.lane.b32.xlu0 %v18, 104
    %v20 = vpop.permute.xlu0 %19
    %vm21 = vcmask 917312
    %22 = vst.msk [vmem:[#allocation0] sm:$0x1] %vm21, %v20
    %s23 = scalar_lea.vmem %s0, 12
    %v24 = vld [vmem:[%s23] sm:$0x1]
    %25 = vrot.lane.b32.xlu0 %v24, 96
    %v26 = vpop.permute.xlu0 %25
    %vm27 = vcmask 851712
    %28 = vst.msk [vmem:[#allocation0] sm:$0x1] %vm27, %v26
    %s29 = scalar_lea.vmem %s0, 11
    %v30 = vld [vmem:[%s29] sm:$0x1]
    %31 = vrot.lane.b32.xlu0 %v30, 88
    %v32 = vpop.permute.xlu0 %31
    %vm33 = vcmask 786112
    %34 = vst.msk [vmem:[#allocation0] sm:$0x1] %vm33, %v32
    %s35 = scalar_lea.vmem %s0, 10
    %v36 = vld [vmem:[%s35] sm:$0x1]
    %37 = vrot.lane.b32.xlu0 %v36, 80
    %v38 = vpop.permute.xlu0 %37
    %vm39 = vcmask 720512
    %40 = vst.msk [vmem:[#allocation0] sm:$0x1] %vm39, %v38
    %s41 = scalar_lea.vmem %s0, 9
    %v42 = vld [vmem:[%s41] sm:$0x1]
    %43 = vrot.lane.b32.xlu0 %v42, 72
    %v44 = vpop.permute.xlu0 %43
    %vm45 = vcmask 654912
    %46 = vst.msk [vmem:[#allocation0] sm:$0x1] %vm45, %v44
    %s47 = scalar_lea.vmem %s0, 8
    %v48 = vld [vmem:[%s47] sm:$0x1]
    %49 = vrot.lane.b32.xlu0 %v48, 64
    %v50 = vpop.permute.xlu0 %49
    %vm51 = vcmask 589312
    %52 = vst.msk [vmem:[#allocation0] sm:$0x1] %vm51, %v50
    %s53 = scalar_lea.vmem %s0, 7
    %v54 = vld [vmem:[%s53] sm:$0x1]
    %55 = vrot.lane.b32.xlu0 %v54, 56
    %v56 = vpop.permute.xlu0 %55
    %vm57 = vcmask 523712
    %58 = vst.msk [vmem:[#allocation0] sm:$0x1] %vm57, %v56
    %s59 = scalar_lea.vmem %s0, 6
    %v60 = vld [vmem:[%s59] sm:$0x1]
    %61 = vrot.lane.b32.xlu0 %v60, 48
    %v62 = vpop.permute.xlu0 %61
    %vm63 = vcmask 458112
    %64 = vst.msk [vmem:[#allocation0] sm:$0x1] %vm63, %v62
    %s65 = scalar_lea.vmem %s0, 5
    %v66 = vld [vmem:[%s65] sm:$0x1]
    %67 = vrot.lane.b32.xlu0 %v66, 40
    %v68 = vpop.permute.xlu0 %67
    %vm69 = vcmask 392512
    %70 = vst.msk [vmem:[#allocation0] sm:$0x1] %vm69, %v68
    %s71 = scalar_lea.vmem %s0, 4
    %v72 = vld [vmem:[%s71] sm:$0x1]
    %73 = vrot.lane.b32.xlu0 %v72, 32
    %v74 = vpop.permute.xlu0 %73
    %vm75 = vcmask 326912
    %76 = vst.msk [vmem:[#allocation0] sm:$0x1] %vm75, %v74
    %s77 = scalar_lea.vmem %s0, 3
    %v78 = vld [vmem:[%s77] sm:$0x1]
    %79 = vrot.lane.b32.xlu0 %v78, 24
    %v80 = vpop.permute.xlu0 %79
    %vm81 = vcmask 261312
    %82 = vst.msk [vmem:[#allocation0] sm:$0x1] %vm81, %v80
    %s83 = scalar_lea.vmem %s0, 2
    %v84 = vld [vmem:[%s83] sm:$0x1]
    %85 = vrot.lane.b32.xlu0 %v84, 16
    %v86 = vpop.permute.xlu0 %85
    %vm87 = vcmask 195712
    %88 = vst.msk [vmem:[#allocation0] sm:$0x1] %vm87, %v86
    %s89 = scalar_lea.vmem %s0, 1
    %v90 = vld [vmem:[%s89] sm:$0x1]
    %91 = vrot.lane.b32.xlu0 %v90, 8
    %v92 = vpop.permute.xlu0 %91
    %vm93 = vcmask 130112
    %94 = vst.msk [vmem:[#allocation0] sm:$0x1] %vm93, %v92
    %s96 = sshllo.u32 0, 1
    %v98 = vld [vmem:[#allocation0] sm:%s96]
    %s99 = sshllo.u32 0, 1
    %100 = vst [vmem:[%s1] sm:%s99] %v98

// kernel: convl_forward.1
$region0: #{convl_forward.1}
  #allocation0 [shape = 'u32[]', space=smem, size = 0x4, offset = 0x4, fixed_abs, tag = 'smem constant byte address 0x4 - core index']
  #allocation1 [shape = 'u32[144,128]{1,0:T(1,128)}', space=vmem, size = 0x12000, scoped, tag = 'internal scratch']
  %s0 = inlined_call_operand.vmem [shape: bf16[2,18,72], index: 0, kind: input, shape index: {}]
  %s1 = inlined_call_operand.vmem [shape: bf16[3,72,128], index: 1, kind: input, shape index: {}]
  %s2 = inlined_call_operand.vmem [shape: f32[1,128], index: 2, kind: input, shape index: {}]
  %s3 = inlined_call_operand.vmem [shape: f32[1,128], index: 3, kind: input, shape index: {}]
  %s4 = inlined_call_operand.vmem [shape: f32[1,128], index: 4, kind: input, shape index: {}]
  %s5 = inlined_call_operand.vmem [shape: f32[2,16,128], index: 5, kind: output, shape index: {}]
  %s6 = sld [smem:[#allocation0]]
  $region53: #{convl_forward.1} parent=0
    _
  %s8 = ssub.s32 1, %s6
  %s9 = scalar_select 0, %s8, %s6
  loop: start=0, step=1, limit=4
  $region2: #{convl_forward.1} parent=0 // loop_pre_header
    _
  $region3: #{convl_forward.1} parent=0 // loop_header
    %s11 = sphi 0, %s15
    %p12 = scmp.ge.s32.totalorder %s11, 4
    %s21 = sphi 0, %s23
    %s24 = sphi 0, %s21
    %s25 = sphi 0, %s24
    %s41 = sphi 0, %s25
    %s45 = sphi 0, %s45
    %s47 = sphi 0, %s45
    %s48 = sphi 0, %s47
    %s62 = sphi 0, %s48
    %s66 = sphi 0, %s66
    %s68 = sphi 0, %s66
    %s69 = sphi 0, %s68
    %s83 = sphi 0, %s69
    %s87 = sphi 0, %s87
    %s89 = sphi 0, %s87
    %s90 = sphi 0, %s89
    %s104 = sphi 0, %s90
    %s108 = sphi 0, %s108
    %s110 = sphi 0, %s108
    %s111 = sphi 0, %s110
    %s125 = sphi 0, %s111
    %s131 = sphi 0, %s133
    %s134 = sphi 0, %s131
    %s135 = sphi 0, %s134
    %s151 = sphi 0, %s135
  $region4: #{convl_forward.1} parent=0 // loop_header_branch
    %14 = sbr.rel (%p12) target = $region8
  $region5: #{convl_forward.1} parent=0 // loop_body
    %s16 = ssub.s32 %s11, 1
    %s17 = ssub.s32 %s11, 2
    %s18 = sadd.s32 %s11, 1
    %s19 = ssub.s32 %s11, %s18
    %p20 = scmp.eq.s32.totalorder %s19, 0
    %s22 = sadd.s32 %s21, 1
    %s23 = scalar_select %p20, %s21, %s22
    %p26 = pneg %p20
    %p27 = scmp.eq.s32.totalorder %s11, 1
    %p28 = por %p26, %p27
    %p29 = scmp.ne.s32.totalorder %s21, %s24
    %p30 = scmp.eq.s32.totalorder %s11, 0
    %p31 = por %p29, %p30
    %p32 = scmp.ne.s32.totalorder %s21, %s24
    %p33 = scmp.eq.s32.totalorder %s16, 1
    %p34 = por %p32, %p33
    %p35 = scmp.ne.s32.totalorder %s24, %s25
    %p36 = scmp.eq.s32.totalorder %s16, 0
    %p37 = por %p35, %p36
    %p38 = scmp.ne.s32.totalorder %s24, %s25
    %p39 = scmp.eq.s32.totalorder %s17, 1
    %p40 = por %p38, %p39
    %p42 = scmp.ne.s32.totalorder %s25, %s41
    %p43 = scmp.eq.s32.totalorder %s17, 0
    %p44 = por %p42, %p43
    %s46 = sadd.s32 %s45, 1
    %p49 = scmp.eq.s32.totalorder %s11, 1
    %p50 = scmp.ne.s32.totalorder %s45, %s47
    %p51 = scmp.eq.s32.totalorder %s11, 0
    %p52 = por %p50, %p51
    %p53 = scmp.ne.s32.totalorder %s45, %s47
    %p54 = scmp.eq.s32.totalorder %s16, 1
    %p55 = por %p53, %p54
    %p56 = scmp.ne.s32.totalorder %s47, %s48
    %p57 = scmp.eq.s32.totalorder %s16, 0
    %p58 = por %p56, %p57
    %p59 = scmp.ne.s32.totalorder %s47, %s48
    %p60 = scmp.eq.s32.totalorder %s17, 1
    %p61 = por %p59, %p60
    %p63 = scmp.ne.s32.totalorder %s48, %s62
    %p64 = scmp.eq.s32.totalorder %s17, 0
    %p65 = por %p63, %p64
    %s67 = sadd.s32 %s66, 1
    %p70 = scmp.eq.s32.totalorder %s11, 1
    %p71 = scmp.ne.s32.totalorder %s66, %s68
    %p72 = scmp.eq.s32.totalorder %s11, 0
    %p73 = por %p71, %p72
    %p74 = scmp.ne.s32.totalorder %s66, %s68
    %p75 = scmp.eq.s32.totalorder %s16, 1
    %p76 = por %p74, %p75
    %p77 = scmp.ne.s32.totalorder %s68, %s69
    %p78 = scmp.eq.s32.totalorder %s16, 0
    %p79 = por %p77, %p78
    %p80 = scmp.ne.s32.totalorder %s68, %s69
    %p81 = scmp.eq.s32.totalorder %s17, 1
    %p82 = por %p80, %p81
    %p84 = scmp.ne.s32.totalorder %s69, %s83
    %p85 = scmp.eq.s32.totalorder %s17, 0
    %p86 = por %p84, %p85
    %s88 = sadd.s32 %s87, 1
    %p91 = scmp.eq.s32.totalorder %s11, 1
    %p92 = scmp.ne.s32.totalorder %s87, %s89
    %p93 = scmp.eq.s32.totalorder %s11, 0
    %p94 = por %p92, %p93
    %p95 = scmp.ne.s32.totalorder %s87, %s89
    %p96 = scmp.eq.s32.totalorder %s16, 1
    %p97 = por %p95, %p96
    %p98 = scmp.ne.s32.totalorder %s89, %s90
    %p99 = scmp.eq.s32.totalorder %s16, 0
    %p100 = por %p98, %p99
    %p101 = scmp.ne.s32.totalorder %s89, %s90
    %p102 = scmp.eq.s32.totalorder %s17, 1
    %p103 = por %p101, %p102
    %p105 = scmp.ne.s32.totalorder %s90, %s104
    %p106 = scmp.eq.s32.totalorder %s17, 0
    %p107 = por %p105, %p106
    %s109 = sadd.s32 %s108, 1
    %p112 = scmp.eq.s32.totalorder %s11, 1
    %p113 = scmp.ne.s32.totalorder %s108, %s110
    %p114 = scmp.eq.s32.totalorder %s11, 0
    %p115 = por %p113, %p114
    %p116 = scmp.ne.s32.totalorder %s108, %s110
    %p117 = scmp.eq.s32.totalorder %s16, 1
    %p118 = por %p116, %p117
    %p119 = scmp.ne.s32.totalorder %s110, %s111
    %p120 = scmp.eq.s32.totalorder %s16, 0
    %p121 = por %p119, %p120
    %p122 = scmp.ne.s32.totalorder %s110, %s111
    %p123 = scmp.eq.s32.totalorder %s17, 1
    %p124 = por %p122, %p123
    %p126 = scmp.ne.s32.totalorder %s111, %s125
    %p127 = scmp.eq.s32.totalorder %s17, 0
    %p128 = por %p126, %p127
    %s129 = ssub.s32 %s11, %s18
    %p130 = scmp.eq.s32.totalorder %s129, 0
    %s132 = sadd.s32 %s131, 1
    %s133 = scalar_select %p130, %s131, %s132
    %p136 = pneg %p130
    %p137 = scmp.eq.s32.totalorder %s11, 1
    %p138 = por %p136, %p137
    %p139 = scmp.ne.s32.totalorder %s131, %s134
    %p140 = scmp.eq.s32.totalorder %s11, 0
    %p141 = por %p139, %p140
    %p142 = scmp.ne.s32.totalorder %s131, %s134
    %p143 = scmp.eq.s32.totalorder %s16, 1
    %p144 = por %p142, %p143
    %p145 = scmp.ne.s32.totalorder %s134, %s135
    %p146 = scmp.eq.s32.totalorder %s16, 0
    %p147 = por %p145, %p146
    %p148 = scmp.ne.s32.totalorder %s134, %s135
    %p149 = scmp.eq.s32.totalorder %s17, 1
    %p150 = por %p148, %p149
    %p152 = scmp.ne.s32.totalorder %s135, %s151
    %p153 = scmp.eq.s32.totalorder %s17, 0
    %p154 = por %p152, %p153
    %p155 = scmp.le.s32.totalorder 1, %s11
    %p156 = scmp.lt.s32.totalorder %s11, 3
    %p157 = pnand %p155, %p156
    %p158 = pneg %p157
    // Predicated region
    $region9: #{convl_forward.1} parent=5 // pred_check
      _
    $region10: #{convl_forward.1} parent=5 // pred_check_branch
      %160 = sbr.rel (%p157) target = $region12
    $region11: #{convl_forward.1} parent=5 // pred_region
      %s161 = ssub.s32 %s11, 1
      // Predicated region
      $region13: #{convl_forward.1} parent=11 // pred_check
        %p162 = pneg %p58
      $region14: #{convl_forward.1} parent=11 // pred_check_branch
        %164 = sbr.rel (%p162) target = $region16
      $region15: #{convl_forward.1} parent=11 // pred_region
        _
      $region16: #{convl_forward.1} parent=11 // pred_fallthru
        _
      // Predicated region
      $region17: #{convl_forward.1} parent=11 // pred_check
        %p165 = pneg %p79
      $region18: #{convl_forward.1} parent=11 // pred_check_branch
        %167 = sbr.rel (%p165) target = $region20
      $region19: #{convl_forward.1} parent=11 // pred_region
        _
      $region20: #{convl_forward.1} parent=11 // pred_fallthru
        _
      // Predicated region
      $region21: #{convl_forward.1} parent=11 // pred_check
        %p168 = pneg %p100
      $region22: #{convl_forward.1} parent=11 // pred_check_branch
        %170 = sbr.rel (%p168) target = $region24
      $region23: #{convl_forward.1} parent=11 // pred_region
        _
      $region24: #{convl_forward.1} parent=11 // pred_fallthru
        _
      // Predicated region
      $region25: #{convl_forward.1} parent=11 // pred_check
        %p171 = pneg %p121
      $region26: #{convl_forward.1} parent=11 // pred_check_branch
        %173 = sbr.rel (%p171) target = $region28
      $region27: #{convl_forward.1} parent=11 // pred_region
        _
      $region28: #{convl_forward.1} parent=11 // pred_fallthru
        _
    $region12: #{convl_forward.1} parent=5 // pred_fallthru
      _
    %p174 = scmp.lt.s32.totalorder %s11, 2
    // Predicated region
    $region29: #{convl_forward.1} parent=5 // pred_check
      %p175 = pneg %p174
    $region30: #{convl_forward.1} parent=5 // pred_check_branch
      %177 = sbr.rel (%p175) target = $region32
    $region31: #{convl_forward.1} parent=5 // pred_region
      // Predicated region
      $region33: #{convl_forward.1} parent=31 // pred_check
        %p178 = pneg %p31
      $region34: #{convl_forward.1} parent=31 // pred_check_branch
        %180 = sbr.rel (%p178) target = $region36
      $region35: #{convl_forward.1} parent=31 // pred_region
        %p181 = scmp.lt.s32.totalorder %s11, 1
        %s182 = scalar_select %p181, %s11, 1
        %s183 = smul.addr %s182, 3
        %s184 = smul.addr %s183, 4
        %s185 = scalar_lea.vmem %s0, %s184
      $region36: #{convl_forward.1} parent=31 // pred_fallthru
        _
    $region32: #{convl_forward.1} parent=5 // pred_fallthru
      _
    %p186 = scmp.le.s32.totalorder 1, %s11
    %p187 = scmp.lt.s32.totalorder %s11, 3
    %p188 = pnand %p186, %p187
    %p189 = pneg %p188
    // Predicated region
    $region37: #{convl_forward.1} parent=5 // pred_check
      _
    $region38: #{convl_forward.1} parent=5 // pred_check_branch
      %191 = sbr.rel (%p188) target = $region40
    $region39: #{convl_forward.1} parent=5 // pred_region
      %s192 = ssub.s32 %s11, 1
      %p193 = scmp.lt.s32.totalorder %s16, 1
      %s194 = scalar_select %p193, %s16, 1
      %s195 = smul.addr %s194, 3
      %s196 = smul.addr %s195, 4
      %s197 = scalar_lea.vmem %s0, %s196
      %p198 = pneg %p37
      %p199 = pneg %p34
      %p200 = pneg %p58
      %p201 = pneg %p55
      %p202 = pneg %p79
      %p203 = pneg %p76
      %p204 = pneg %p100
      %p205 = pneg %p97
      %p206 = pneg %p121
      %p207 = pneg %p118
      %p208 = pneg %p147
      %p209 = pneg %p144
      %p210 = scmp.lt.s32.totalorder %s16, 1
      %s211 = scalar_select %p210, %s16, 1
      %s212 = smul.addr %s211, 2
      %s213 = smul.addr %s212, 8
      %s214 = scalar_lea.vmem %s5, %s213
      %p215 = scmp.lt.s32.totalorder %s16, 1
      %s216 = scalar_select %p215, %s16, 1
      %s217 = smul.addr %s216, 3
      %s218 = smul.addr %s217, 4
      %s219 = scalar_lea.vmem %s0, %s218
      %p220 = scmp.lt.s32.totalorder %s16, 1
      %s221 = scalar_select %p220, %s16, 1
      %s222 = smul.addr %s221, 2
      %s223 = smul.addr %s222, 8
      %s224 = scalar_lea.vmem %s5, %s223
      %v226 = vld [vmem:[%s219] sm:$0xf]
      %v227 = vld [vmem:[%s219 + $0x4] sm:$0xf]
      %v228 = vld [vmem:[%s219 + $0x8] sm:$0x1]
      %v229 = vld [vmem:[%s1] sm:$0xf]
      %v230 = vld [vmem:[%s1 + $0x4] sm:$0xf]
      %v231 = vld [vmem:[%s1 + $0x8] sm:$0xf]
      %v232 = vld [vmem:[%s1 + $0xc] sm:$0xf]
      %v233 = vld [vmem:[%s1 + $0x10] sm:$0xf]
      %v234 = vld [vmem:[%s1 + $0x14] sm:$0xf]
      %v235 = vld [vmem:[%s1 + $0x18] sm:$0xf]
      %v236 = vld [vmem:[%s1 + $0x1c] sm:$0xf]
      %v237 = vld [vmem:[%s1 + $0x20] sm:$0xf]
      %s238 = scalar_lea.vmem %s1, 36
      %v239 = vld [vmem:[%s238] sm:$0xf]
      %v240 = vld [vmem:[%s238 + $0x4] sm:$0xf]
      %v241 = vld [vmem:[%s238 + $0x8] sm:$0xf]
      %v242 = vld [vmem:[%s238 + $0xc] sm:$0xf]
      %v243 = vld [vmem:[%s238 + $0x10] sm:$0xf]
      %v244 = vld [vmem:[%s238 + $0x14] sm:$0xf]
      %v245 = vld [vmem:[%s238 + $0x18] sm:$0xf]
      %v246 = vld [vmem:[%s238 + $0x1c] sm:$0xf]
      %v247 = vld [vmem:[%s238 + $0x20] sm:$0xf]
      %v251 = vunpack.c.l.b16 %v226
      %v252 = vunpack.c.l.b16 %v227
      %v253 = vunpack.c.l.b16 %v228
      %v254 = vpack.c.b16 %v252, %v251
      %v255 = vpack.c.b16 %v253, %v253
      %vm256 = vsmask.f32 7424
      %v258 = vshrl.u32 %v254, 16
      %v260 = vshll.u32 %v254, 16
      %v262 = vrot.slane %v260, 1
      %v263 = vor.u32 %v258, %v262
      %v265 = vshll.u32 %v255, 16
      %v267 = vrot.slane %v265, 1
      %v268 = vsel %vm256, %v263, %v267
      %v278 = vunpack.c.l.b16 %v239
      %v279 = vunpack.c.l.b16 %v240
      %v280 = vunpack.c.l.b16 %v241
      %v281 = vunpack.c.l.b16 %v242
      %v282 = vunpack.c.l.b16 %v243
      %v283 = vunpack.c.l.b16 %v244
      %v284 = vunpack.c.l.b16 %v245
      %v285 = vunpack.c.l.b16 %v246
      %v286 = vunpack.c.l.b16 %v247
      %v287 = vpack.c.b16 %v279, %v278
      %v288 = vpack.c.b16 %v281, %v280
      %v289 = vpack.c.b16 %v283, %v282
      %v290 = vpack.c.b16 %v285, %v284
      %v291 = vpack.c.b16 %v286, %v286
      %vm296 = vcmask 588800
      %v298 = vsel %vm296, %v268, 0
      %vm300 = vcmask 1043456
      %v302 = vsel %vm300, %v291, 0
      %304 = vmatprep.subr.bf16.mxu0 0
      %305 = vmatpush1.bf16.msra.mxu0 %v287
      %306 = vmatprep.subr.bf16.mxu0 0
      %307 = vmatpush1.bf16.msra.mxu0 %v288
      %308 = vmatprep.subr.bf16.mxu0 0
      %309 = vmatpush1.bf16.msra.mxu0 %v289
      %310 = vmatprep.subr.bf16.mxu0 0
      %311 = vmatpush1.bf16.msra.mxu0 %v290
      %312 = vmatprep.subr.bf16.mxu0 0
      %313 = vmatpush1.bf16.msra.mxu0 %v302
      %314 = vmatprep.subr.bf16.mxu0 0
      %315 = vmatpush1.bf16.msra.mxu0 0
      %316 = vmatprep.subr.bf16.mxu0 0
      %317 = vmatpush1.bf16.msra.mxu0 0
      %318 = vmatprep.subr.bf16.mxu0 0
      %319 = vmatpush1.bf16.msra.mxu0 0
      %320 = vmatprep.subr.bf16.mxu0 0
      %321 = vmatpush1.bf16.msra.mxu0 0
      %322 = vmatprep.subr.bf16.mxu0 0
      %323 = vmatpush1.bf16.msra.mxu0 0
      %324 = vmatprep.subr.bf16.mxu0 0
      %325 = vmatpush1.bf16.msra.mxu0 0
      %326 = vmatprep.subr.bf16.mxu0 0
      %327 = vmatpush1.bf16.msra.mxu0 0
      %328 = vmatprep.subr.bf16.mxu0 0
      %329 = vmatpush1.bf16.msra.mxu0 0
      %330 = vmatprep.subr.bf16.mxu0 0
      %331 = vmatpush1.bf16.msra.mxu0 0
      %332 = vmatprep.subr.bf16.mxu0 0
      %333 = vmatpush1.bf16.msra.mxu0 0
      %334 = vmatprep.subr.bf16.mxu0 0
      %335 = vmatpush1.bf16.msra.mxu0 0
      %336 = vmatprep.mubr.bf16.mxu0 0
      %337 = vmatmul.mubr.bf16.gmra.mrb[0].mxu0 %v298
      %v338 = vpop.f32.mrb[0].mxu0
      %v339 = vadd.f32 0.0, %v338
      %v340 = vpop.f32.mrb[0].mxu0
      %v341 = vpop.f32.mrb[0].mxu0
      %v342 = vadd.f32 0.0, %v341
      %v343 = vpop.f32.mrb[0].mxu0
      %344 = vdwg.mxu0
      %v354 = vunpack.c.l.b16 %v229
      %v355 = vunpack.c.l.b16 %v230
      %v356 = vunpack.c.l.b16 %v231
      %v357 = vunpack.c.l.b16 %v232
      %v358 = vunpack.c.l.b16 %v233
      %v359 = vunpack.c.l.b16 %v234
      %v360 = vunpack.c.l.b16 %v235
      %v361 = vunpack.c.l.b16 %v236
      %v362 = vunpack.c.l.b16 %v237
      %v363 = vpack.c.b16 %v355, %v354
      %v364 = vpack.c.b16 %v357, %v356
      %v365 = vpack.c.b16 %v359, %v358
      %v366 = vpack.c.b16 %v361, %v360
      %v367 = vpack.c.b16 %v362, %v362
      %v372 = vsel %vm296, %v254, 0
      %v375 = vsel %vm300, %v367, 0
      %377 = vmatprep.subr.bf16.mxu0 0
      %378 = vmatpush1.bf16.msra.mxu0 %v363
      %379 = vmatprep.subr.bf16.mxu0 0
      %380 = vmatpush1.bf16.msra.mxu0 %v364
      %381 = vmatprep.subr.bf16.mxu0 0
      %382 = vmatpush1.bf16.msra.mxu0 %v365
      %383 = vmatprep.subr.bf16.mxu0 0
      %384 = vmatpush1.bf16.msra.mxu0 %v366
      %385 = vmatprep.subr.bf16.mxu0 0
      %386 = vmatpush1.bf16.msra.mxu0 %v375
      %387 = vmatprep.subr.bf16.mxu0 0
      %388 = vmatpush1.bf16.msra.mxu0 0
      %389 = vmatprep.subr.bf16.mxu0 0
      %390 = vmatpush1.bf16.msra.mxu0 0
      %391 = vmatprep.subr.bf16.mxu0 0
      %392 = vmatpush1.bf16.msra.mxu0 0
      %393 = vmatprep.subr.bf16.mxu0 0
      %394 = vmatpush1.bf16.msra.mxu0 0
      %395 = vmatprep.subr.bf16.mxu0 0
      %396 = vmatpush1.bf16.msra.mxu0 0
      %397 = vmatprep.subr.bf16.mxu0 0
      %398 = vmatpush1.bf16.msra.mxu0 0
      %399 = vmatprep.subr.bf16.mxu0 0
      %400 = vmatpush1.bf16.msra.mxu0 0
      %401 = vmatprep.subr.bf16.mxu0 0
      %402 = vmatpush1.bf16.msra.mxu0 0
      %403 = vmatprep.subr.bf16.mxu0 0
      %404 = vmatpush1.bf16.msra.mxu0 0
      %405 = vmatprep.subr.bf16.mxu0 0
      %406 = vmatpush1.bf16.msra.mxu0 0
      %407 = vmatprep.subr.bf16.mxu0 0
      %408 = vmatpush1.bf16.msra.mxu0 0
      %409 = vmatprep.mubr.bf16.mxu0 0
      %410 = vmatmul.mubr.bf16.gmra.mrb[0].mxu0 %v372
      %v411 = vpop.f32.mrb[0].mxu0
      %v412 = vadd.f32 %v339, %v411
      %v413 = vpop.f32.mrb[0].mxu0
      %v414 = vpop.f32.mrb[0].mxu0
      %v415 = vadd.f32 %v342, %v414
      %v416 = vpop.f32.mrb[0].mxu0
      %417 = vdwg.mxu0
      %s418 = scalar_lea.vmem %s1, 72
      %v419 = vld [vmem:[%s418] sm:$0xf]
      %v420 = vld [vmem:[%s418 + $0x4] sm:$0xf]
      %v421 = vld [vmem:[%s418 + $0x8] sm:$0xf]
      %v422 = vld [vmem:[%s418 + $0xc] sm:$0xf]
      %v423 = vld [vmem:[%s418 + $0x10] sm:$0xf]
      %v424 = vld [vmem:[%s418 + $0x14] sm:$0xf]
      %v425 = vld [vmem:[%s418 + $0x18] sm:$0xf]
      %v426 = vld [vmem:[%s418 + $0x1c] sm:$0xf]
      %v427 = vld [vmem:[%s418 + $0x20] sm:$0xf]
      %vm428 = vcmask 1046528
      %v429 = vrot.slane %v254, 1
      %v430 = vrot.slane %v255, 1
      %v431 = vsel %vm428, %v429, %v430
      %v441 = vunpack.c.l.b16 %v419
      %v442 = vunpack.c.l.b16 %v420
      %v443 = vunpack.c.l.b16 %v421
      %v444 = vunpack.c.l.b16 %v422
      %v445 = vunpack.c.l.b16 %v423
      %v446 = vunpack.c.l.b16 %v424
      %v447 = vunpack.c.l.b16 %v425
      %v448 = vunpack.c.l.b16 %v426
      %v449 = vunpack.c.l.b16 %v427
      %v450 = vpack.c.b16 %v442, %v441
      %v451 = vpack.c.b16 %v444, %v443
      %v452 = vpack.c.b16 %v446, %v445
      %v453 = vpack.c.b16 %v448, %v447
      %v454 = vpack.c.b16 %v449, %v449
      %v460 = vsel %vm296, %v431, 0
      %v463 = vsel %vm300, %v454, 0
      %465 = vmatprep.subr.bf16.mxu0 0
      %466 = vmatpush1.bf16.msra.mxu0 %v450
      %467 = vmatprep.subr.bf16.mxu0 0
      %468 = vmatpush1.bf16.msra.mxu0 %v451
      %469 = vmatprep.subr.bf16.mxu0 0
      %470 = vmatpush1.bf16.msra.mxu0 %v452
      %471 = vmatprep.subr.bf16.mxu0 0
      %472 = vmatpush1.bf16.msra.mxu0 %v453
      %473 = vmatprep.subr.bf16.mxu0 0
      %474 = vmatpush1.bf16.msra.mxu0 %v463
      %475 = vmatprep.subr.bf16.mxu0 0
      %476 = vmatpush1.bf16.msra.mxu0 0
      %477 = vmatprep.subr.bf16.mxu0 0
      %478 = vmatpush1.bf16.msra.mxu0 0
      %479 = vmatprep.subr.bf16.mxu0 0
      %480 = vmatpush1.bf16.msra.mxu0 0
      %481 = vmatprep.subr.bf16.mxu0 0
      %482 = vmatpush1.bf16.msra.mxu0 0
      %483 = vmatprep.subr.bf16.mxu0 0
      %484 = vmatpush1.bf16.msra.mxu0 0
      %485 = vmatprep.subr.bf16.mxu0 0
      %486 = vmatpush1.bf16.msra.mxu0 0
      %487 = vmatprep.subr.bf16.mxu0 0
      %488 = vmatpush1.bf16.msra.mxu0 0
      %489 = vmatprep.subr.bf16.mxu0 0
      %490 = vmatpush1.bf16.msra.mxu0 0
      %491 = vmatprep.subr.bf16.mxu0 0
      %492 = vmatpush1.bf16.msra.mxu0 0
      %493 = vmatprep.subr.bf16.mxu0 0
      %494 = vmatpush1.bf16.msra.mxu0 0
      %495 = vmatprep.subr.bf16.mxu0 0
      %496 = vmatpush1.bf16.msra.mxu0 0
      %497 = vmatprep.mubr.bf16.mxu0 0
      %498 = vmatmul.mubr.bf16.gmra.mrb[0].mxu0 %v460
      %v499 = vpop.f32.mrb[0].mxu0
      %v500 = vadd.f32 0.0, %v499
      %v501 = vpop.f32.mrb[0].mxu0
      %v502 = vpop.f32.mrb[0].mxu0
      %v503 = vadd.f32 0.0, %v502
      %v504 = vpop.f32.mrb[0].mxu0
      %505 = vdwg.mxu0
      %v506 = vadd.f32 %v412, %v500
      %v507 = vadd.f32 %v415, %v503
      %v508 = vadd.f32 %v506, %v507
      %509 = vadd.xlane.f32.xlu0 %v508
      %v510 = vpop.xlane.xlu0 %509
      %v511 = vrot.slane %v510, 4
      %v512 = vadd.f32 %v510, %v511
      %v513 = vrot.slane %v512, 2
      %v514 = vadd.f32 %v512, %v513
      %v515 = vrot.slane %v514, 1
      %v516 = vadd.f32 %v514, %v515
      %v517 = vmul.f32 %v506, %v506
      %v518 = vmul.f32 %v507, %v507
      %v519 = vadd.f32 %v517, %v518
      %520 = vadd.xlane.f32.xlu0 %v519
      %v521 = vpop.xlane.xlu0 %520
      %v522 = vrot.slane %v521, 4
      %v523 = vadd.f32 %v521, %v522
      %v524 = vrot.slane %v523, 2
      %v525 = vadd.f32 %v523, %v524
      %v526 = vrot.slane %v525, 1
      %v527 = vadd.f32 %v525, %v526
      %v528 = vrcp.pop 2048.0
      %v529 = vmul.f32 %v516, %v528
      %v530 = vmul.f32 %v527, %v528
      %v531 = vmul.f32 %v529, %v529
      %v532 = vsub.f32 %v530, %v531
      %v533 = vadd.f32 %v532, 1e-05
      %v534 = vrsqrt.pop %v533
      %v535 = vld [vmem:[%s2] sm:$0x1]
      %v536 = vmul.f32 %v534, %v535
      %v537 = vsub.f32 %v506, %v529
      %v538 = vsub.f32 %v507, %v529
      %v540 = vlaneseq
      %v541 = vshrl.u32 %v540, 7
      %v542 = vsub.s32 0, %v541
      %v543 = vrot.slane %v536, %v542
      %v545 = vmul.f32 %v537, %v543
      %v546 = vmul.f32 %v538, %v543
      %v547 = vld [vmem:[%s3] sm:$0x1]
      %v549 = vlaneseq
      %v550 = vshrl.u32 %v549, 7
      %v551 = vsub.s32 0, %v550
      %v552 = vrot.slane %v547, %v551
      %v554 = vadd.f32 %v545, %v552
      %v555 = vadd.f32 %v546, %v552
      %vm556 = vcmp.gt.f32.partialorder %v554, 0.0
      %vm557 = vcmp.gt.f32.partialorder %v555, 0.0
      %v558 = vld [vmem:[%s4] sm:$0x1]
      %v560 = vlaneseq
      %v561 = vshrl.u32 %v560, 7
      %v562 = vsub.s32 0, %v561
      %v563 = vrot.slane %v558, %v562
      %v565 = vmul.f32 %v563, %v554
      %v566 = vmul.f32 %v563, %v555
      %v567 = vsel %vm556, %v554, %v565
      %v568 = vsel %vm557, %v555, %v566
      %569 = vst [vmem:[%s224] sm:$0xff] %v567
      %570 = vst [vmem:[%s224 + $0x8] sm:$0xff] %v568
      %p571 = scmp.lt.s32.totalorder %s16, 1
      %s572 = scalar_select %p571, %s16, 1
      %s573 = smul.addr %s572, 2
      %s574 = smul.addr %s573, 8
      %s575 = scalar_lea.vmem %s5, %s574
      // Predicated region
      $region41: #{convl_forward.1} parent=39 // pred_check
        %p576 = pneg %p144
      $region42: #{convl_forward.1} parent=39 // pred_check_branch
        %578 = sbr.rel (%p576) target = $region44
      $region43: #{convl_forward.1} parent=39 // pred_region
        _
      $region44: #{convl_forward.1} parent=39 // pred_fallthru
        _
    $region40: #{convl_forward.1} parent=5 // pred_fallthru
      _
    %p579 = scmp.le.s32.totalorder 2, %s11
    // Predicated region
    $region45: #{convl_forward.1} parent=5 // pred_check
      %p580 = pneg %p579
    $region46: #{convl_forward.1} parent=5 // pred_check_branch
      %582 = sbr.rel (%p580) target = $region48
    $region47: #{convl_forward.1} parent=5 // pred_region
      %s583 = ssub.s32 %s11, 2
      // Predicated region
      $region49: #{convl_forward.1} parent=47 // pred_check
        %p584 = pneg %p150
      $region50: #{convl_forward.1} parent=47 // pred_check_branch
        %586 = sbr.rel (%p584) target = $region52
      $region51: #{convl_forward.1} parent=47 // pred_region
        %p587 = scmp.lt.s32.totalorder %s17, 1
        %s588 = scalar_select %p587, %s17, 1
        %s589 = smul.addr %s588, 2
        %s590 = smul.addr %s589, 8
        %s591 = scalar_lea.vmem %s5, %s590
      $region52: #{convl_forward.1} parent=47 // pred_fallthru
        _
    $region48: #{convl_forward.1} parent=5 // pred_fallthru
      _
  $region6: #{convl_forward.1} parent=0 // loop_footer
    %s15 = sadd.s32 1, %s11
  $region7: #{convl_forward.1} parent=0 // loop_footer_branch
    %10 = sbr.rel target = $region3
  $region8: #{convl_forward.1} parent=0 // loop_exit
    _

</llo_original>
